<compile_context>
chip_gen: v7x
topology: tpu7x:2x2x1
jax: 0.10.0
libtpu: 0.0.40
codegen_flags: <defaults>
</compile_context>

<pallas_src>
import jax
import jax.numpy as jnp
from jax.experimental import pallas as pl
from jax.experimental.pallas import tpu as pltpu


def _after_diffusion_kernel(x_ref, a_ref, b_ref, o_ref):
    # x_ref/o_ref: (rows_tile, tT); a_ref/b_ref: (rows_tile, 1) -> lane broadcast.
    x = x_ref[...].astype(jnp.float32)
    o_ref[...] = (x * a_ref[...] + b_ref[...]).astype(o_ref.dtype)


def _pick_tiles(R, T, dtype, target_block_bytes, max_rows_tile, max_time_tile):
    """VMEM-budget-driven tile selection.

    rows_tile: full extent if small, else a multiple of the sublane pack.
    tT:        multiple of 128 sized so one x block is ~target_block_bytes.
    """
    dtype_bytes = jnp.dtype(dtype).itemsize
    sublane = max(8, 32 // dtype_bytes)  # 8 for f32, 16 for bf16

    if R <= max_rows_tile:
        rows_tile = R  # full extent: always a legal block shape
    else:
        rows_tile = max(sublane, (max_rows_tile // sublane) * sublane)

    t_padded = pl.cdiv(T, 128) * 128
    budget_elems = max(1, target_block_bytes // dtype_bytes)
    tT = (budget_elems // max(rows_tile, 1)) // 128 * 128
    tT = min(max(tT, 128), t_padded)
    if max_time_tile is not None:
        tT = min(tT, max(128, (max_time_tile // 128) * 128))
    return rows_tile, tT


def after_diffusion(
    x,
    spec_max,
    spec_min,
    v_type="a",
    target_block_bytes=3 * 1024 * 1024,
    max_rows_tile=512,
    max_time_tile=None,
    core_parallel=False,
):
    """x: [B, 1, M, T]. spec_max/spec_min: [M] per-mel-bin buffers.

    Returns [B, M, T], identical to the PyTorch AfterDiffusion.forward output.
    Set core_parallel=True on v7x to split the grid across both TensorCores.
    """
    assert x.ndim == 4 and x.shape[1] == 1, "expected [B, 1, M, T]"
    B, _, M, T = x.shape
    R = B * M
    # Squeeze channel and collapse (B, M) -> rows (contiguous reshape, free).
    x2d = x[:, 0].reshape(R, T)

    # Fold the affine:  (x + 1)/2 * (max - min) + min  ==  x*a + b
    smax = spec_max.astype(jnp.float32)
    smin = spec_min.astype(jnp.float32)
    a = 0.5 * (smax - smin)
    b = 0.5 * (smax + smin)
    if v_type == "nsf-hifigan-log10":
        a = a * 0.434294
        b = b * 0.434294
    # Per-row coefficients: row r = b*M + m  ->  coeff index  r % M.
    a_rows = jnp.tile(a, B).reshape(R, 1)
    b_rows = jnp.tile(b, B).reshape(R, 1)

    rows_tile, tT = _pick_tiles(
        R, T, x.dtype, target_block_bytes, max_rows_tile, max_time_tile
    )
    grid = (pl.cdiv(R, rows_tile), pl.cdiv(T, tT))

    if core_parallel:
        # v7x: actually shard the leading grid axis across the two TensorCores.
        dims = (pltpu.CORE_PARALLEL, pltpu.PARALLEL)
    else:
        dims = ("parallel", "parallel")

    out2d = pl.pallas_call(
        _after_diffusion_kernel,
        out_shape=jax.ShapeDtypeStruct((R, T), x.dtype),
        grid_spec=pltpu.PrefetchScalarGridSpec(
            num_scalar_prefetch=0,
            grid=grid,
            in_specs=[
                pl.BlockSpec((rows_tile, tT), lambda r, t: (r, t)),
                pl.BlockSpec((rows_tile, 1), lambda r, t: (r, 0)),
                pl.BlockSpec((rows_tile, 1), lambda r, t: (r, 0)),
            ],
            out_specs=pl.BlockSpec((rows_tile, tT), lambda r, t: (r, t)),
        ),
        compiler_params=pltpu.CompilerParams(
            dimension_semantics=dims,
            vmem_limit_bytes=32 * 1024 * 1024,
        ),
    )(x2d, a_rows, b_rows)

    return out2d.reshape(B, M, T)


def _reference(x, spec_max, spec_min, v_type="a"):
    # Pure-JAX mirror of the PyTorch graph (squeeze/permute/denorm/transpose), f32.
    x_btm = jnp.transpose(x[:, 0].astype(jnp.float32), (0, 2, 1))        # [B, T, M]
    ref = (x_btm + 1.0) / 2.0 * (spec_max - spec_min) + spec_min         # bcast over M
    if v_type == "nsf-hifigan-log10":
        ref = ref * 0.434294
    return jnp.transpose(ref, (0, 2, 1))                                 # [B, M, T]


if __name__ == "__main__":
    key = jax.random.PRNGKey(0)
    k1, k2, k3 = jax.random.split(key, 3)

    # --- Case 1: f32, forced small tiles -> multi-step grid in BOTH axes.
    B, M, T = 2, 16, 512
    x = jax.random.normal(k1, (B, 1, M, T), dtype=jnp.float32)
    spec_min = -6.0 + 0.1 * jnp.arange(M, dtype=jnp.float32)
    spec_max = 1.5 + 0.05 * jnp.arange(M, dtype=jnp.float32)

    out = jax.block_until_ready(
        after_diffusion(x, spec_max, spec_min, max_rows_tile=16, max_time_tile=128)
    )
    ref = _reference(x, spec_max, spec_min)
    assert out.shape == (B, M, T)
    assert jnp.allclose(out, ref, atol=1e-5, rtol=1e-5)

    # nsf-hifigan-log10 variant (scale folded into the affine in the wrapper).
    out_log = jax.block_until_ready(
        after_diffusion(x, spec_max, spec_min, v_type="nsf-hifigan-log10",
                        max_rows_tile=16, max_time_tile=128)
    )
    ref_log = _reference(x, spec_max, spec_min, v_type="nsf-hifigan-log10")
    assert jnp.allclose(out_log, ref_log, atol=1e-5, rtol=1e-5)

    # --- Case 2: default (budget-driven) tile selection.
    out_def = jax.block_until_ready(after_diffusion(x, spec_max, spec_min))
    assert jnp.allclose(out_def, ref, atol=1e-5, rtol=1e-5)

    # --- Case 3: ragged rows (B*M % rows_tile != 0) AND ragged T (T % 128 != 0):
    #             both last blocks rely on Pallas masked stores.
    B3, M3, T3 = 3, 20, 200
    x3 = jax.random.normal(k2, (B3, 1, M3, T3), dtype=jnp.float32)
    smin3 = -5.0 + 0.07 * jnp.arange(M3, dtype=jnp.float32)
    smax3 = 2.0 + 0.03 * jnp.arange(M3, dtype=jnp.float32)
    out3 = jax.block_until_ready(
        after_diffusion(x3, smax3, smin3, max_rows_tile=16, max_time_tile=128)
    )
    ref3 = _reference(x3, smax3, smin3)
    assert out3.shape == (B3, M3, T3)
    assert jnp.allclose(out3, ref3, atol=1e-5, rtol=1e-5)

    # --- Case 4: bf16 end-to-end I/O (halves HBM traffic; compute still f32).
    x4 = jax.random.normal(k3, (B, 1, M, 384), dtype=jnp.float32).astype(jnp.bfloat16)
    out4 = jax.block_until_ready(after_diffusion(x4, spec_max, spec_min))
    assert out4.dtype == jnp.bfloat16
    ref4 = _reference(x4, spec_max, spec_min)
    assert jnp.allclose(out4.astype(jnp.float32), ref4, atol=5e-2, rtol=5e-2)

    print("KERNEL_OK")
</pallas_src>

<mosaic_0001>
module attributes {stable_mosaic.version = 11 : i64} {
  func.func @_after_diffusion_kernel(%arg0: i32, %arg1: i32, %arg2: memref<16x128xf32, #tpu.memory_space<vmem>>, %arg3: memref<16x1xf32, #tpu.memory_space<vmem>>, %arg4: memref<16x1xf32, #tpu.memory_space<vmem>>, %arg5: memref<16x128xf32, #tpu.memory_space<vmem>>) attributes {dimension_semantics = [#tpu.dimension_semantics<parallel>, #tpu.dimension_semantics<parallel>], iteration_bounds = array<i64: 2, 4>, scalar_prefetch = 0 : i64, scratch_operands = 0 : i64, tpu.core_type = #tpu.core_type<tc>, window_params = [{transform_indices = @transform_0, window_bounds = array<i64: 16, 128>}, {transform_indices = @transform_1, window_bounds = array<i64: 16, 1>}, {transform_indices = @transform_2, window_bounds = array<i64: 16, 1>}, {transform_indices = @transform_3, window_bounds = array<i64: 16, 128>}]} {
    %c0 = arith.constant 0 : index
    %c0_0 = arith.constant 0 : index
    %0 = vector.load %arg2[%c0, %c0_0] : memref<16x128xf32, #tpu.memory_space<vmem>>, vector<16x128xf32>
    %c0_1 = arith.constant 0 : index
    %c0_2 = arith.constant 0 : index
    %1 = vector.load %arg3[%c0_1, %c0_2] : memref<16x1xf32, #tpu.memory_space<vmem>>, vector<16x1xf32>
    %2 = vector.broadcast %1 : vector<16x1xf32> to vector<16x128xf32>
    %3 = arith.mulf %0, %2 : vector<16x128xf32>
    %c0_3 = arith.constant 0 : index
    %c0_4 = arith.constant 0 : index
    %4 = vector.load %arg4[%c0_3, %c0_4] : memref<16x1xf32, #tpu.memory_space<vmem>>, vector<16x1xf32>
    %5 = vector.broadcast %4 : vector<16x1xf32> to vector<16x128xf32>
    %6 = arith.addf %3, %5 : vector<16x128xf32>
    %c0_5 = arith.constant 0 : index
    %c0_6 = arith.constant 0 : index
    %7 = vector.load %arg5[%c0_5, %c0_6] : memref<16x128xf32, #tpu.memory_space<vmem>>, vector<16x128xf32>
    tpu.vector_store %arg5[%c0_5, %c0_6], %6 {strides = array<i32>} : memref<16x128xf32, #tpu.memory_space<vmem>>, vector<16x128xf32>,
    return
  }
  func.func @transform_0(%arg0: i32, %arg1: i32) -> (i32, i32) {
    %c0_i32 = arith.constant 0 : i32
    return %arg0, %arg1 : i32, i32
  }
  func.func @transform_1(%arg0: i32, %arg1: i32) -> (i32, i32) {
    %c0_i32 = arith.constant 0 : i32
    %c0_i32_0 = arith.constant 0 : i32
    return %arg0, %c0_i32 : i32, i32
  }
  func.func @transform_2(%arg0: i32, %arg1: i32) -> (i32, i32) {
    %c0_i32 = arith.constant 0 : i32
    %c0_i32_0 = arith.constant 0 : i32
    return %arg0, %c0_i32 : i32, i32
  }
  func.func @transform_3(%arg0: i32, %arg1: i32) -> (i32, i32) {
    %c0_i32 = arith.constant 0 : i32
    return %arg0, %arg1 : i32, i32
  }
}

</mosaic_0001>

<llo_original>
// kernel: tpu_custom_call.1
$region0: #{tpu_custom_call.1}
  #allocation0 [shape = 'u32[]', space=smem, size = 0x4, offset = 0x4, fixed_abs, tag = 'smem constant byte address 0x4 - core index']
  #allocation1 [shape = 'u32[144,128]{1,0:T(1,128)}', space=vmem, size = 0x12000, scoped, tag = 'internal scratch']
  %s0 = inlined_call_operand.hbm [shape: f32[32,512], index: 0, kind: input, shape index: {}]
  %s1 = inlined_call_operand.vmem [shape: f32[32,1], index: 1, kind: input, shape index: {}]
  %s2 = inlined_call_operand.vmem [shape: f32[32,1], index: 2, kind: input, shape index: {}]
  %s3 = inlined_call_operand.hbm [shape: f32[32,512], index: 3, kind: output, shape index: {}]
  %s4 = sld [smem:[#allocation0]]
  $region49: #{tpu_custom_call.1} parent=0
    _
  %s6 = ssub.s32 1, %s4
  %s7 = scalar_select 0, %s6, %s4
  $region1: #{tpu_custom_call.1} parent=0
    #allocation2 [shape = 'u8[16384]{0}', space=vmem, size = 0x4000, scoped, tag = 'input window, operand 0']
    #allocation3 [shape = 's32[2]{0}', space=sflag, size = 0x8, scoped, tag = 'scoped memory for tpu_custom_call.1']
    #allocation4 [shape = 's32[2]{0}', space=sflag, size = 0x8, scoped, tag = 'scoped memory for tpu_custom_call.1']
    #allocation5 [shape = 'u8[16384]{0}', space=vmem, size = 0x4000, scoped, tag = 'output window, operand 0']
    %8 = vsyncpa [#allocation3], 0
    %s9 = scalar_lea.sflag [#allocation3], 1
    %10 = vsyncpa %s9, 0
    %11 = vsyncpa [#allocation4], 0
    %s12 = scalar_lea.sflag [#allocation4], 1
    %13 = vsyncpa %s12, 0
    loop: start=0, step=1, limit=10
    $region2: #{tpu_custom_call.1} parent=1 // loop_pre_header
      _
    $region3: #{tpu_custom_call.1} parent=1 // loop_header
      %s15 = sphi 0, %s19
      %p16 = scmp.ge.s32.totalorder %s15, 10
      %s22 = sphi 0, %s34
      %s23 = sphi 0, %s30
      %s24 = sphi 0, %s22
      %s25 = sphi 0, %s23
      %s26 = sphi 0, %s24
      %s27 = sphi 0, %s25
      %s39 = sphi 0, %s41
      %s42 = sphi 0, %s39
      %s43 = sphi 0, %s42
      %s59 = sphi 0, %s43
      %s65 = sphi 0, %s67
      %s68 = sphi 0, %s65
      %s69 = sphi 0, %s68
      %s85 = sphi 0, %s69
      %s91 = sphi 0, %s93
      %s94 = sphi 0, %s91
      %s95 = sphi 0, %s94
      %s111 = sphi 0, %s95
      %s119 = sphi 0, %s121
      %s122 = sphi 0, %s119
      %s123 = sphi 0, %s122
      %s139 = sphi 0, %s123
    $region4: #{tpu_custom_call.1} parent=1 // loop_header_branch
      %18 = sbr.rel (%p16) target = $region8
    $region5: #{tpu_custom_call.1} parent=1 // loop_body
      %s20 = ssub.s32 %s15, 1
      %s21 = ssub.s32 %s15, 2
      %s28 = sadd.s32 1, %s23
      %p29 = scmp.ge.s32.totalorder %s28, 4
      %s30 = scalar_select %p29, 0, %s28
      %s31 = sadd.s32 1, %s22
      %s32 = scalar_select %p29, %s31, %s22
      %p33 = scmp.ge.s32.totalorder %s32, 2
      %s34 = scalar_select %p33, 0, %s32
      %s35 = ssub.s32 %s22, %s34
      %s36 = ssub.s32 %s23, %s30
      %s37 = sor.u32 %s35, %s36
      %p38 = scmp.eq.s32.totalorder %s37, 0
      %s40 = sadd.s32 %s39, 1
      %s41 = scalar_select %p38, %s39, %s40
      %p44 = pneg %p38
      %p45 = scmp.eq.s32.totalorder %s15, 7
      %p46 = por %p44, %p45
      %p47 = scmp.ne.s32.totalorder %s39, %s42
      %p48 = scmp.eq.s32.totalorder %s15, 0
      %p49 = por %p47, %p48
      %p50 = scmp.ne.s32.totalorder %s39, %s42
      %p51 = scmp.eq.s32.totalorder %s20, 7
      %p52 = por %p50, %p51
      %p53 = scmp.ne.s32.totalorder %s42, %s43
      %p54 = scmp.eq.s32.totalorder %s20, 0
      %p55 = por %p53, %p54
      %p56 = scmp.ne.s32.totalorder %s42, %s43
      %p57 = scmp.eq.s32.totalorder %s21, 7
      %p58 = por %p56, %p57
      %p60 = scmp.ne.s32.totalorder %s43, %s59
      %p61 = scmp.eq.s32.totalorder %s21, 0
      %p62 = por %p60, %p61
      %s63 = ssub.s32 %s22, %s34
      %p64 = scmp.eq.s32.totalorder %s63, 0
      %s66 = sadd.s32 %s65, 1
      %s67 = scalar_select %p64, %s65, %s66
      %p70 = pneg %p64
      %p71 = scmp.eq.s32.totalorder %s15, 7
      %p72 = por %p70, %p71
      %p73 = scmp.ne.s32.totalorder %s65, %s68
      %p74 = scmp.eq.s32.totalorder %s15, 0
      %p75 = por %p73, %p74
      %p76 = scmp.ne.s32.totalorder %s65, %s68
      %p77 = scmp.eq.s32.totalorder %s20, 7
      %p78 = por %p76, %p77
      %p79 = scmp.ne.s32.totalorder %s68, %s69
      %p80 = scmp.eq.s32.totalorder %s20, 0
      %p81 = por %p79, %p80
      %p82 = scmp.ne.s32.totalorder %s68, %s69
      %p83 = scmp.eq.s32.totalorder %s21, 7
      %p84 = por %p82, %p83
      %p86 = scmp.ne.s32.totalorder %s69, %s85
      %p87 = scmp.eq.s32.totalorder %s21, 0
      %p88 = por %p86, %p87
      %s89 = ssub.s32 %s22, %s34
      %p90 = scmp.eq.s32.totalorder %s89, 0
      %s92 = sadd.s32 %s91, 1
      %s93 = scalar_select %p90, %s91, %s92
      %p96 = pneg %p90
      %p97 = scmp.eq.s32.totalorder %s15, 7
      %p98 = por %p96, %p97
      %p99 = scmp.ne.s32.totalorder %s91, %s94
      %p100 = scmp.eq.s32.totalorder %s15, 0
      %p101 = por %p99, %p100
      %p102 = scmp.ne.s32.totalorder %s91, %s94
      %p103 = scmp.eq.s32.totalorder %s20, 7
      %p104 = por %p102, %p103
      %p105 = scmp.ne.s32.totalorder %s94, %s95
      %p106 = scmp.eq.s32.totalorder %s20, 0
      %p107 = por %p105, %p106
      %p108 = scmp.ne.s32.totalorder %s94, %s95
      %p109 = scmp.eq.s32.totalorder %s21, 7
      %p110 = por %p108, %p109
      %p112 = scmp.ne.s32.totalorder %s95, %s111
      %p113 = scmp.eq.s32.totalorder %s21, 0
      %p114 = por %p112, %p113
      %s115 = ssub.s32 %s22, %s34
      %s116 = ssub.s32 %s23, %s30
      %s117 = sor.u32 %s115, %s116
      %p118 = scmp.eq.s32.totalorder %s117, 0
      %s120 = sadd.s32 %s119, 1
      %s121 = scalar_select %p118, %s119, %s120
      %p124 = pneg %p118
      %p125 = scmp.eq.s32.totalorder %s15, 7
      %p126 = por %p124, %p125
      %p127 = scmp.ne.s32.totalorder %s119, %s122
      %p128 = scmp.eq.s32.totalorder %s15, 0
      %p129 = por %p127, %p128
      %p130 = scmp.ne.s32.totalorder %s119, %s122
      %p131 = scmp.eq.s32.totalorder %s20, 7
      %p132 = por %p130, %p131
      %p133 = scmp.ne.s32.totalorder %s122, %s123
      %p134 = scmp.eq.s32.totalorder %s20, 0
      %p135 = por %p133, %p134
      %p136 = scmp.ne.s32.totalorder %s122, %s123
      %p137 = scmp.eq.s32.totalorder %s21, 7
      %p138 = por %p136, %p137
      %p140 = scmp.ne.s32.totalorder %s123, %s139
      %p141 = scmp.eq.s32.totalorder %s21, 0
      %p142 = por %p140, %p141
      %p143 = scmp.le.s32.totalorder 1, %s15
      %p144 = scmp.lt.s32.totalorder %s15, 9
      %p145 = pnand %p143, %p144
      %p146 = pneg %p145
      // Predicated region
      $region9: #{tpu_custom_call.1} parent=5 // pred_check
        _
      $region10: #{tpu_custom_call.1} parent=5 // pred_check_branch
        %148 = sbr.rel (%p145) target = $region12
      $region11: #{tpu_custom_call.1} parent=5 // pred_region
        %s149 = ssub.s32 %s15, 1
      $region12: #{tpu_custom_call.1} parent=5 // pred_fallthru
        _
      %p150 = scmp.lt.s32.totalorder %s15, 8
      // Predicated region
      $region13: #{tpu_custom_call.1} parent=5 // pred_check
        %p151 = pneg %p150
      $region14: #{tpu_custom_call.1} parent=5 // pred_check_branch
        %153 = sbr.rel (%p151) target = $region16
      $region15: #{tpu_custom_call.1} parent=5 // pred_region
        // Predicated region
        $region17: #{tpu_custom_call.1} parent=15 // pred_check
          %p154 = pneg %p49
        $region18: #{tpu_custom_call.1} parent=15 // pred_check_branch
          %156 = sbr.rel (%p154) target = $region20
        $region19: #{tpu_custom_call.1} parent=15 // pred_region
          %s157 = sand.u32 %s39, 1
          %s158 = scalar_lea.sflag [#allocation3], %s157
          %s159 = sand.u32 %s39, 1
          %s160 = smul.addr %s159, 16
          %s161 = scalar_lea.vmem [#allocation2], %s160
          %s162 = smul.u32 2, %s22
          %s164 = ssub.s32 256, 256
          %165 = vsyncadd %s158, %s164
          %s166 = smul.addr %s162, 4
          %s167 = sadd.s32 %s23, %s166
          %s168 = smul.addr %s167, 128
          %s169 = scalar_lea.hbm %s0, %s168
          %s170 = sshll.u32 %s161, 4
          %s171 = int_to_ptr.vmem [resolvable:$true] %s170
          %176 = dma.hbm_to_vmem [thread:$0]  %s169, 256, %s171, %s158, 512, 128, 8
        $region20: #{tpu_custom_call.1} parent=15 // pred_fallthru
          _
        // Predicated region
        $region21: #{tpu_custom_call.1} parent=15 // pred_check
          %p177 = pneg %p75
        $region22: #{tpu_custom_call.1} parent=15 // pred_check_branch
          %179 = sbr.rel (%p177) target = $region24
        $region23: #{tpu_custom_call.1} parent=15 // pred_region
          %s180 = smul.u32 2, %s22
          %p181 = scmp.lt.s32.totalorder %s180, 3
          %s182 = scalar_select %p181, %s180, 3
          %s183 = smul.addr %s182, 8
          %s184 = scalar_lea.vmem %s1, %s183
          %s185 = smul.u32 2, %s22
        $region24: #{tpu_custom_call.1} parent=15 // pred_fallthru
          _
        // Predicated region
        $region25: #{tpu_custom_call.1} parent=15 // pred_check
          %p186 = pneg %p101
        $region26: #{tpu_custom_call.1} parent=15 // pred_check_branch
          %188 = sbr.rel (%p186) target = $region28
        $region27: #{tpu_custom_call.1} parent=15 // pred_region
          %s189 = smul.u32 2, %s22
          %p190 = scmp.lt.s32.totalorder %s189, 3
          %s191 = scalar_select %p190, %s189, 3
          %s192 = smul.addr %s191, 8
          %s193 = scalar_lea.vmem %s2, %s192
          %s194 = smul.u32 2, %s22
        $region28: #{tpu_custom_call.1} parent=15 // pred_fallthru
          _
      $region16: #{tpu_custom_call.1} parent=5 // pred_fallthru
        _
      %p195 = scmp.le.s32.totalorder 1, %s15
      %p196 = scmp.lt.s32.totalorder %s15, 9
      %p197 = pnand %p195, %p196
      %p198 = pneg %p197
      // Predicated region
      $region29: #{tpu_custom_call.1} parent=5 // pred_check
        _
      $region30: #{tpu_custom_call.1} parent=5 // pred_check_branch
        %200 = sbr.rel (%p197) target = $region32
      $region31: #{tpu_custom_call.1} parent=5 // pred_region
        %s201 = ssub.s32 %s15, 1
        %s202 = sand.u32 %s42, 1
        %s203 = scalar_lea.sflag [#allocation3], %s202
        %s204 = sand.u32 %s42, 1
        %s205 = smul.addr %s204, 16
        %s206 = scalar_lea.vmem [#allocation2], %s205
        // Predicated region
        $region33: #{tpu_custom_call.1} parent=31 // pred_check
          %p207 = pneg %p55
        $region34: #{tpu_custom_call.1} parent=31 // pred_check_branch
          %209 = sbr.rel (%p207) target = $region36
        $region35: #{tpu_custom_call.1} parent=31 // pred_region
          %210 = dma.done %s203, 256
        $region36: #{tpu_custom_call.1} parent=31 // pred_fallthru
          _
        %s211 = sand.u32 %s42, 1
        %s212 = scalar_lea.sflag [#allocation3], %s211
        %s213 = sand.u32 %s42, 1
        %s214 = smul.addr %s213, 16
        %s215 = scalar_lea.vmem [#allocation2], %s214
        %p216 = pneg %p55
        %p217 = pneg %p52
        %s218 = smul.u32 2, %s24
        %p219 = scmp.lt.s32.totalorder %s218, 3
        %s220 = scalar_select %p219, %s218, 3
        %s221 = smul.addr %s220, 8
        %s222 = scalar_lea.vmem %s1, %s221
        %p223 = pneg %p81
        %p224 = pneg %p78
        %s225 = smul.u32 2, %s24
        %p226 = scmp.lt.s32.totalorder %s225, 3
        %s227 = scalar_select %p226, %s225, 3
        %s228 = smul.addr %s227, 8
        %s229 = scalar_lea.vmem %s2, %s228
        %p230 = pneg %p107
        %p231 = pneg %p104
        %p232 = pneg %p135
        %p233 = pneg %p132
        %s234 = sand.u32 %s122, 1
        %s235 = scalar_lea.sflag [#allocation4], %s234
        %s236 = sand.u32 %s122, 1
        %s237 = smul.addr %s236, 16
        %s238 = scalar_lea.vmem [#allocation5], %s237
        %s239 = smul.u32 2, %s24
        %s240 = smul.u32 2, %s24
        %p241 = scmp.lt.s32.totalorder %s240, 3
        %s242 = scalar_select %p241, %s240, 3
        %s243 = smul.addr %s242, 8
        %s244 = scalar_lea.vmem %s1, %s243
        %s245 = smul.u32 2, %s24
        %s246 = smul.u32 2, %s24
        %p247 = scmp.lt.s32.totalorder %s246, 3
        %s248 = scalar_select %p247, %s246, 3
        %s249 = smul.addr %s248, 8
        %s250 = scalar_lea.vmem %s2, %s249
        %s251 = smul.u32 2, %s24
        %s252 = smul.u32 2, %s24
        %v253 = vld [vmem:[%s206] sm:$0xff]
        %v254 = vld [vmem:[%s206 + $0x8] sm:$0xff]
        %v255 = vld [vmem:[%s244] sm:$0xff]
        %v256 = vld [vmem:[%s244 + $0x8] sm:$0xff]
        %258 = vset.pattern.permute.xlu0 0
        %259 = vperm.xlu0 %258, %v255
        %v260 = vpop.permute.xlu0 %259
        %263 = vset.pattern.permute.xlu0 0
        %264 = vperm.xlu0 %263, %v256
        %v265 = vpop.permute.xlu0 %264
        %v267 = vmul.f32 %v253, %v260
        %v268 = vmul.f32 %v254, %v265
        %v269 = vld [vmem:[%s250] sm:$0xff]
        %v270 = vld [vmem:[%s250 + $0x8] sm:$0xff]
        %272 = vset.pattern.permute.xlu0 0
        %273 = vperm.xlu0 %272, %v269
        %v274 = vpop.permute.xlu0 %273
        %277 = vset.pattern.permute.xlu0 0
        %278 = vperm.xlu0 %277, %v270
        %v279 = vpop.permute.xlu0 %278
        %v281 = vadd.f32 %v267, %v274
        %v282 = vadd.f32 %v268, %v279
        %283 = vst [vmem:[%s238] sm:$0xff] %v281
        %284 = vst [vmem:[%s238 + $0x8] sm:$0xff] %v282
        %s285 = sand.u32 %s122, 1
        %s286 = scalar_lea.sflag [#allocation4], %s285
        %s287 = sand.u32 %s122, 1
        %s288 = smul.addr %s287, 16
        %s289 = scalar_lea.vmem [#allocation5], %s288
        // Predicated region
        $region37: #{tpu_custom_call.1} parent=31 // pred_check
          %p290 = pneg %p132
        $region38: #{tpu_custom_call.1} parent=31 // pred_check_branch
          %292 = sbr.rel (%p290) target = $region40
        $region39: #{tpu_custom_call.1} parent=31 // pred_region
          %s293 = smul.u32 2, %s24
          %s295 = ssub.s32 256, 256
          %296 = vsyncadd %s286, %s295
          %s297 = smul.addr %s293, 4
          %s298 = sadd.s32 %s25, %s297
          %s299 = smul.addr %s298, 128
          %s300 = scalar_lea.hbm %s3, %s299
          %s301 = sshll.u32 %s289, 4
          %s302 = int_to_ptr.vmem [resolvable:$true] %s301
          %307 = dma.vmem_to_hbm [thread:$0]  %s302, 256, %s300, %s286, 128, 512, 8
        $region40: #{tpu_custom_call.1} parent=31 // pred_fallthru
          _
      $region32: #{tpu_custom_call.1} parent=5 // pred_fallthru
        _
      %p308 = scmp.le.s32.totalorder 2, %s15
      // Predicated region
      $region41: #{tpu_custom_call.1} parent=5 // pred_check
        %p309 = pneg %p308
      $region42: #{tpu_custom_call.1} parent=5 // pred_check_branch
        %311 = sbr.rel (%p309) target = $region44
      $region43: #{tpu_custom_call.1} parent=5 // pred_region
        %s312 = ssub.s32 %s15, 2
        // Predicated region
        $region45: #{tpu_custom_call.1} parent=43 // pred_check
          %p313 = pneg %p138
        $region46: #{tpu_custom_call.1} parent=43 // pred_check_branch
          %315 = sbr.rel (%p313) target = $region48
        $region47: #{tpu_custom_call.1} parent=43 // pred_region
          %s316 = sand.u32 %s123, 1
          %s317 = scalar_lea.sflag [#allocation4], %s316
          %s318 = sand.u32 %s123, 1
          %s319 = smul.addr %s318, 16
          %s320 = scalar_lea.vmem [#allocation5], %s319
          %321 = dma.done %s317, 256
        $region48: #{tpu_custom_call.1} parent=43 // pred_fallthru
          _
      $region44: #{tpu_custom_call.1} parent=5 // pred_fallthru
        _
    $region6: #{tpu_custom_call.1} parent=1 // loop_footer
      %s19 = sadd.s32 1, %s15
    $region7: #{tpu_custom_call.1} parent=1 // loop_footer_branch
      %14 = sbr.rel target = $region3
    $region8: #{tpu_custom_call.1} parent=1 // loop_exit
      _
    %322 = vsyncpa [#allocation3], 1
    %s323 = scalar_lea.sflag [#allocation3], 1
    %324 = vsyncpa %s323, 1
    %325 = vsyncpa [#allocation4], 1
    %s326 = scalar_lea.sflag [#allocation4], 1
    %327 = vsyncpa %s326, 1

</llo_original>
